<compile_context>
chip_gen: v7x
topology: tpu7x:2x2x1
jax: 0.10.0
libtpu: 0.0.40
codegen_flags: <defaults>
</compile_context>

<pallas_src>
import math

import jax
import jax.numpy as jnp
import numpy as np
from jax.experimental import pallas as pl
from jax.experimental.pallas import tpu as pltpu

# ---- Linear_mvm default fixed-point / crossbar configuration -----------------
BIT_SLICE   = 2                                # original model parameters
BIT_STREAM  = 1
WEIGHT_BITS = 16
WEIGHT_FRAC = WEIGHT_BITS // 4 * 3             # 12
INPUT_BITS  = 16
INPUT_FRAC  = INPUT_BITS // 4 * 3              # 12
ACM_BITS    = 16
ACM_FRAC    = ACM_BITS // 4 * 3                # 12
XBAR_SIZE   = 64                               # non-genieX crossbar is 64x64
ADC_BITS    = int(math.log2(XBAR_SIZE)) + BIT_SLICE   # 8 -> ADC max 255 > 64*3: never clips
OUT_SCALE   = float(2.0 ** (-(WEIGHT_FRAC + INPUT_FRAC)))

# Folded (exactly equivalent) representation used by the kernel -- see header comment.
# NOTE: if bit_slice / bit_stream / xbar size change such that the ADC can saturate,
# the fold (and the dropped ADC clamp) are no longer valid.
FOLD_BITS  = 8
N_SLICES   = WEIGHT_BITS // FOLD_BITS          # 2 folded weight slices per sign
N_STREAMS  = INPUT_BITS // FOLD_BITS           # 2 folded input byte-streams
GROUPS     = 2 * N_SLICES                      # [pos_lo, pos_hi, neg_lo, neg_hi]

LANE = 128                                     # lane width / tile granularity


# ------------------------------- Pallas kernel --------------------------------
def _mvm_xbar_kernel(lhs_ref,                  # (2*Bt, Kt) bf16: rows [0:Bt]=low byte,
                     #                                        [Bt:2Bt]=signed high byte * 2^8
                     w_ref,                    # (Kt, 4*n)  bf16: [pos_lo|pos_hi*2^8|neg_lo|neg_hi*2^8]
                     bias_ref,                 # (1, n)     f32
                     out_ref,                  # (Bt, n)    f32
                     acc_pos, acc_neg):        # VMEM scratch (Bt, n) f32
    kk = pl.program_id(2)

    @pl.when(kk == 0)
    def _():
        acc_pos[...] = jnp.zeros_like(acc_pos)
        acc_neg[...] = jnp.zeros_like(acc_neg)

    bt, n = out_ref.shape

    # One fused MXU matmul: 2 folded input streams (sublane blocks) x 2 folded weight
    # slices x {pos, neg} (lane blocks).  All shift-add scales are pre-folded into the
    # operands, so the crossbar combine below is pure lane/sublane-aligned adds.
    # (Per-crossbar ADC clamp is a provable no-op for this parameterization.)
    m = jnp.dot(lhs_ref[...], w_ref[...], preferred_element_type=jnp.float32)   # (2Bt, 4n)

    pos = (m[:bt, 0:n] + m[:bt, n:2 * n]) + (m[bt:, 0:n] + m[bt:, n:2 * n])
    neg = (m[:bt, 2 * n:3 * n] + m[:bt, 3 * n:4 * n]) + \
          (m[bt:, 2 * n:3 * n] + m[bt:, 3 * n:4 * n])

    acc_pos[...] += pos
    acc_neg[...] += neg

    @pl.when(kk == pl.num_programs(2) - 1)
    def _():
        af = float(2 ** ACM_FRAC)
        lo_c = -float(2 ** (ACM_BITS - 1))
        hi_c = float(2 ** (ACM_BITS - 1) - 1)

        def fx(v):                             # ACM-register fixed-point truncation
            return jnp.clip(jnp.floor(v * (OUT_SCALE * af)), lo_c, hi_c) * (1.0 / af)

        out_ref[...] = (fx(acc_pos[...]) - fx(acc_neg[...]) + bias_ref[...]).astype(out_ref.dtype)


# ------------------------------ weight packing ---------------------------------
def pack_linear_mvm(weight, bias=None, k_tile_cap=1024):
    """One-time packing of a Linear_mvm weight into the folded bit-sliced [pos|neg]
    crossbar layout.  Cache the result and reuse it across forward calls."""
    assert k_tile_cap >= LANE and k_tile_cap % LANE == 0
    out_f, in_f = weight.shape
    if bias is None:
        bias = jnp.zeros((out_f,), jnp.float32)

    # lane-dense output tiles; keep 128 for skinny layers (better TC parallelism)
    out_tile = 256 if out_f > 256 else LANE
    n_tiles = math.ceil(out_f / out_tile)
    out_pad = n_tiles * out_tile
    k_tile = min(k_tile_cap, LANE * math.ceil(in_f / LANE))
    k_pad = k_tile * math.ceil(in_f / k_tile)
    k_grid = k_pad // k_tile

    # ---- weight -> 16-bit fixed point, pos/neg split, folded 8-bit slices ----
    # TODO(synk): exact rounding mode of the original bit_slicing() is not published;
    #             floor is used (matches the numpy reference below).
    wscale = 2.0 ** WEIGHT_FRAC
    wmax = 2.0 ** WEIGHT_BITS - 1
    wq_pos = jnp.clip(jnp.floor(jnp.maximum(weight, 0.0) * wscale), 0.0, wmax).astype(jnp.int32)
    wq_neg = jnp.clip(jnp.floor(jnp.abs(jnp.minimum(weight, 0.0)) * wscale), 0.0, wmax).astype(jnp.int32)

    def folded_slices(wq):                     # (2, out_f, in_f): [low byte, high byte * 2^8]
        lo = (wq & 0xFF).astype(jnp.float32)                      # 0..255  (exact in bf16)
        hi = (wq >> 8).astype(jnp.float32) * float(1 << FOLD_BITS)  # (0..255)*256 (exact)
        return jnp.stack([lo, hi], axis=0)

    w_groups = jnp.concatenate([folded_slices(wq_pos), folded_slices(wq_neg)], axis=0)  # (4,O,K)
    w_groups = jnp.pad(w_groups, ((0, 0), (0, out_pad - out_f), (0, k_pad - in_f)))
    w_groups = w_groups.reshape(GROUPS, n_tiles, out_tile, k_pad)
    # column index = tile*GROUPS*out_tile + group*out_tile + channel ; rows = input features
    w_xbar = jnp.transpose(w_groups, (3, 1, 0, 2)).reshape(
        k_pad, n_tiles * GROUPS * out_tile).astype(jnp.bfloat16)

    bias_pad = jnp.pad(bias.astype(jnp.float32), (0, out_pad - out_f)).reshape(1, out_pad)

    return dict(w_xbar=w_xbar, bias=bias_pad, in_f=in_f, out_f=out_f,
                out_tile=out_tile, n_tiles=n_tiles, out_pad=out_pad,
                k_tile=k_tile, k_pad=k_pad, k_grid=k_grid)


# --------------------------------- forward ------------------------------------
def linear_mvm_packed(x, packed):
    """Forward of Linear_mvm (ideal digital crossbar) using a pre-packed weight."""
    batch, in_f = x.shape
    assert in_f == packed["in_f"]
    out_tile, n_tiles = packed["out_tile"], packed["n_tiles"]
    out_pad, k_tile, k_pad, k_grid = (packed["out_pad"], packed["k_tile"],
                                      packed["k_pad"], packed["k_grid"])

    # batch tiling: sublane-aligned, capped so per-step intermediates stay small
    b_tile = min(128, max(8, 8 * math.ceil(batch / 8)))
    b_grid = math.ceil(batch / b_tile)
    b_pad = b_grid * b_tile

    # ---- input: 16-bit two's-complement fixed point, folded into 2 byte-streams ----
    xscale = 2.0 ** INPUT_FRAC
    xi = jnp.clip(jnp.floor(x.astype(jnp.float32) * xscale),
                  -(2.0 ** (INPUT_BITS - 1)), 2.0 ** (INPUT_BITS - 1) - 1).astype(jnp.int32)
    lo = (xi & 0xFF).astype(jnp.float32)                          # 0..255        (exact bf16)
    hi = (xi >> 8).astype(jnp.float32) * float(1 << FOLD_BITS)    # (-128..127)*256 (exact)
    lo = jnp.pad(lo, ((0, b_pad - batch), (0, k_pad - in_f)))
    hi = jnp.pad(hi, ((0, b_pad - batch), (0, k_pad - in_f)))
    # per-batch-tile row layout: [b_tile low-byte rows | b_tile scaled high-byte rows]
    lhs = jnp.stack([lo.reshape(b_grid, b_tile, k_pad),
                     hi.reshape(b_grid, b_tile, k_pad)], axis=1)
    lhs = lhs.reshape(b_grid * N_STREAMS * b_tile, k_pad).astype(jnp.bfloat16)

    cols_per_tile = GROUPS * out_tile

    grid_spec = pltpu.PrefetchScalarGridSpec(
        num_scalar_prefetch=0,
        grid=(b_grid, n_tiles, k_grid),                           # (parallel, parallel, reduction)
        in_specs=[
            pl.BlockSpec((N_STREAMS * b_tile, k_tile), lambda b, j, k: (b, k)),   # byte-streams
            pl.BlockSpec((k_tile, cols_per_tile),      lambda b, j, k: (k, j)),   # fused crossbars
            pl.BlockSpec((1, out_tile),                lambda b, j, k: (0, j)),   # bias
        ],
        out_specs=pl.BlockSpec((b_tile, out_tile), lambda b, j, k: (b, j)),
        scratch_shapes=[pltpu.VMEM((b_tile, out_tile), jnp.float32),
                        pltpu.VMEM((b_tile, out_tile), jnp.float32)],
    )

    out = pl.pallas_call(
        _mvm_xbar_kernel,
        out_shape=jax.ShapeDtypeStruct((b_pad, out_pad), jnp.float32),
        grid_spec=grid_spec,
        compiler_params=pltpu.CompilerParams(
            dimension_semantics=("parallel", "parallel", "arbitrary"),
            vmem_limit_bytes=32 * 1024 * 1024),   # well above need, safe on v7x's 64 MiB VMEM
    )(lhs, packed["w_xbar"], packed["bias"])

    return out[:batch, :packed["out_f"]]


def linear_mvm(x, weight, bias=None, Xbar_params=None, Xbar_model=None, k_tile_cap=1024):
    """Convenience wrapper: packs the weight and runs the forward pass."""
    # TODO(synk): genieX analog non-ideality path (mvm_tensor_nonid, Gon/Goff conductance
    #             model) is not implemented; only the ideal mvm_tensor path is reproduced.
    if Xbar_params is not None and Xbar_params.get("genieX", False):
        raise NotImplementedError("genieX analog crossbar model not implemented")
    return linear_mvm_packed(x, pack_linear_mvm(weight, bias, k_tile_cap))


# --------------------------- pure-numpy reference ------------------------------
def linear_mvm_reference(x, weight, bias):
    xi = np.clip(np.floor(np.asarray(x, np.float64) * 2.0 ** INPUT_FRAC),
                 -(2 ** (INPUT_BITS - 1)), 2 ** (INPUT_BITS - 1) - 1)
    wp = np.clip(np.floor(np.clip(np.asarray(weight, np.float64), 0, None) * 2.0 ** WEIGHT_FRAC),
                 0, 2 ** WEIGHT_BITS - 1)
    wn = np.clip(np.floor(np.abs(np.clip(np.asarray(weight, np.float64), None, 0)) * 2.0 ** WEIGHT_FRAC),
                 0, 2 ** WEIGHT_BITS - 1)

    def fx(v):
        q = np.clip(np.floor(v * OUT_SCALE * 2.0 ** ACM_FRAC),
                    -(2 ** (ACM_BITS - 1)), 2 ** (ACM_BITS - 1) - 1)
        return q / 2.0 ** ACM_FRAC

    return fx(xi @ wp.T) - fx(xi @ wn.T) + np.asarray(bias, np.float64)[None, :]


# ----------------------------------- main --------------------------------------
if __name__ == "__main__":
    key = jax.random.PRNGKey(0)
    kw, kb, kx, kw2, kb2, kx2 = jax.random.split(key, 6)

    Xbar_params = {"genieX": False}            # ideal digital crossbar (mvm_tensor path)

    # --- case 1: small single-tile path (module defaults, batch=2) ---
    in_features, out_features, batch = 32, 16, 2
    weight = jax.random.uniform(kw, (out_features, in_features), jnp.float32, -0.5, 0.5)
    bias   = jax.random.uniform(kb, (out_features,), jnp.float32, -0.1, 0.1)
    x      = jax.random.uniform(kx, (batch, in_features), jnp.float32, -1.0, 1.0)

    out = jax.block_until_ready(linear_mvm(x, weight, bias, Xbar_params))
    ref = linear_mvm_reference(np.asarray(x), np.asarray(weight), np.asarray(bias))
    assert out.shape == (batch, out_features)
    np.testing.assert_allclose(np.asarray(out, np.float64), ref, atol=2e-3)

    # --- case 2: multi-tile path (2 output tiles, 2 K-reduction steps, padded dims),
    #             packing the weight once and reusing it (pack_linear_mvm) ---
    in_features, out_features, batch = 200, 160, 3
    weight2 = jax.random.uniform(kw2, (out_features, in_features), jnp.float32, -0.5, 0.5)
    bias2   = jax.random.uniform(kb2, (out_features,), jnp.float32, -0.1, 0.1)
    x2      = jax.random.uniform(kx2, (batch, in_features), jnp.float32, -1.0, 1.0)

    packed = pack_linear_mvm(weight2, bias2, k_tile_cap=128)      # pack once per weight
    out2 = jax.block_until_ready(linear_mvm_packed(x2, packed))
    ref2 = linear_mvm_reference(np.asarray(x2), np.asarray(weight2), np.asarray(bias2))
    assert out2.shape == (batch, out_features)
    np.testing.assert_allclose(np.asarray(out2, np.float64), ref2, atol=5e-3)

    print("KERNEL_OK")
</pallas_src>

<mosaic_0001>
module attributes {stable_mosaic.version = 11 : i64} {
  func.func @_mvm_xbar_kernel(%arg0: i32, %arg1: i32, %arg2: i32, %arg3: memref<16x128xbf16, #tpu.memory_space<vmem>>, %arg4: memref<128x512xbf16, #tpu.memory_space<vmem>>, %arg5: memref<1x128xf32, #tpu.memory_space<vmem>>, %arg6: memref<8x128xf32, #tpu.memory_space<vmem>>, %arg7: memref<8x128xf32, #tpu.memory_space<vmem>>, %arg8: memref<8x128xf32, #tpu.memory_space<vmem>>) attributes {dimension_semantics = [#tpu.dimension_semantics<parallel>, #tpu.dimension_semantics<parallel>, #tpu.dimension_semantics<arbitrary>], iteration_bounds = array<i64: 1, 1, 1>, scalar_prefetch = 0 : i64, scratch_operands = 2 : i64, tpu.core_type = #tpu.core_type<tc>, window_params = [{transform_indices = @transform_0, window_bounds = array<i64: 16, 128>}, {transform_indices = @transform_1, window_bounds = array<i64: 128, 512>}, {transform_indices = @transform_2, window_bounds = array<i64: 1, 128>}, {transform_indices = @transform_3, window_bounds = array<i64: 8, 128>}]} {
    %c0_i32 = arith.constant 0 : i32
    %0 = arith.cmpi eq, %arg2, %c0_i32 : i32
    %1 = arith.extui %0 : i1 to i32
    %c0_i32_0 = arith.constant 0 : i32
    %2 = arith.cmpi ne, %1, %c0_i32_0 : i32
    scf.if %2 {
      %cst_14 = arith.constant 0.000000e+00 : f32
      %29 = vector.broadcast %cst_14 : f32 to vector<8x128xf32>
      %c0_15 = arith.constant 0 : index
      %c0_16 = arith.constant 0 : index
      %30 = vector.load %arg7[%c0_15, %c0_16] : memref<8x128xf32, #tpu.memory_space<vmem>>, vector<8x128xf32>
      tpu.vector_store %arg7[%c0_15, %c0_16], %29 {strides = array<i32>} : memref<8x128xf32, #tpu.memory_space<vmem>>, vector<8x128xf32>,
      %cst_17 = arith.constant 0.000000e+00 : f32
      %31 = vector.broadcast %cst_17 : f32 to vector<8x128xf32>
      %c0_18 = arith.constant 0 : index
      %c0_19 = arith.constant 0 : index
      %32 = vector.load %arg8[%c0_18, %c0_19] : memref<8x128xf32, #tpu.memory_space<vmem>>, vector<8x128xf32>
      tpu.vector_store %arg8[%c0_18, %c0_19], %31 {strides = array<i32>} : memref<8x128xf32, #tpu.memory_space<vmem>>, vector<8x128xf32>,
    } else {
    }
    %c0 = arith.constant 0 : index
    %c0_1 = arith.constant 0 : index
    %3 = vector.load %arg3[%c0, %c0_1] : memref<16x128xbf16, #tpu.memory_space<vmem>>, vector<16x128xbf16>
    %c0_2 = arith.constant 0 : index
    %c0_3 = arith.constant 0 : index
    %4 = vector.load %arg4[%c0_2, %c0_3] : memref<128x512xbf16, #tpu.memory_space<vmem>>, vector<128x512xbf16>
    %cst = arith.constant dense<0.000000e+00> : vector<16x512xf32>
    %5 = tpu.matmul %3, %4, %cst {dimension_numbers = #tpu.dot_dimension_numbers<[1], [0], [0], [1], [0, 0, 1, 1], [], []>} : vector<16x128xbf16>, vector<128x512xbf16>, vector<16x512xf32> -> vector<16x512xf32>
    %6 = vector.extract_strided_slice %5 {offsets = [0, 0], sizes = [8, 128], strides = [1, 1]} : vector<16x512xf32> to vector<8x128xf32>
    %7 = vector.extract_strided_slice %5 {offsets = [0, 128], sizes = [8, 128], strides = [1, 1]} : vector<16x512xf32> to vector<8x128xf32>
    %8 = arith.addf %6, %7 : vector<8x128xf32>
    %9 = vector.extract_strided_slice %5 {offsets = [8, 0], sizes = [8, 128], strides = [1, 1]} : vector<16x512xf32> to vector<8x128xf32>
    %10 = vector.extract_strided_slice %5 {offsets = [8, 128], sizes = [8, 128], strides = [1, 1]} : vector<16x512xf32> to vector<8x128xf32>
    %11 = arith.addf %9, %10 : vector<8x128xf32>
    %12 = arith.addf %8, %11 : vector<8x128xf32>
    %13 = vector.extract_strided_slice %5 {offsets = [0, 256], sizes = [8, 128], strides = [1, 1]} : vector<16x512xf32> to vector<8x128xf32>
    %14 = vector.extract_strided_slice %5 {offsets = [0, 384], sizes = [8, 128], strides = [1, 1]} : vector<16x512xf32> to vector<8x128xf32>
    %15 = arith.addf %13, %14 : vector<8x128xf32>
    %16 = vector.extract_strided_slice %5 {offsets = [8, 256], sizes = [8, 128], strides = [1, 1]} : vector<16x512xf32> to vector<8x128xf32>
    %17 = vector.extract_strided_slice %5 {offsets = [8, 384], sizes = [8, 128], strides = [1, 1]} : vector<16x512xf32> to vector<8x128xf32>
    %18 = arith.addf %16, %17 : vector<8x128xf32>
    %19 = arith.addf %15, %18 : vector<8x128xf32>
    %c0_4 = arith.constant 0 : index
    %c0_5 = arith.constant 0 : index
    %20 = vector.load %arg7[%c0_4, %c0_5] : memref<8x128xf32, #tpu.memory_space<vmem>>, vector<8x128xf32>
    %21 = arith.addf %20, %12 : vector<8x128xf32>
    %c0_6 = arith.constant 0 : index
    %c0_7 = arith.constant 0 : index
    %22 = vector.load %arg7[%c0_6, %c0_7] : memref<8x128xf32, #tpu.memory_space<vmem>>, vector<8x128xf32>
    tpu.vector_store %arg7[%c0_6, %c0_7], %21 {strides = array<i32>} : memref<8x128xf32, #tpu.memory_space<vmem>>, vector<8x128xf32>,
    %c0_8 = arith.constant 0 : index
    %c0_9 = arith.constant 0 : index
    %23 = vector.load %arg8[%c0_8, %c0_9] : memref<8x128xf32, #tpu.memory_space<vmem>>, vector<8x128xf32>
    %24 = arith.addf %23, %19 : vector<8x128xf32>
    %c0_10 = arith.constant 0 : index
    %c0_11 = arith.constant 0 : index
    %25 = vector.load %arg8[%c0_10, %c0_11] : memref<8x128xf32, #tpu.memory_space<vmem>>, vector<8x128xf32>
    tpu.vector_store %arg8[%c0_10, %c0_11], %24 {strides = array<i32>} : memref<8x128xf32, #tpu.memory_space<vmem>>, vector<8x128xf32>,
    %c0_i32_12 = arith.constant 0 : i32
    %26 = arith.cmpi eq, %arg2, %c0_i32_12 : i32
    %27 = arith.extui %26 : i1 to i32
    %c0_i32_13 = arith.constant 0 : i32
    %28 = arith.cmpi ne, %27, %c0_i32_13 : i32
    scf.if %28 {
      %c0_14 = arith.constant 0 : index
      %c0_15 = arith.constant 0 : index
      %29 = vector.load %arg7[%c0_14, %c0_15] : memref<8x128xf32, #tpu.memory_space<vmem>>, vector<8x128xf32>
      %cst_16 = arith.constant 2.44140625E-4 : f32
      %30 = vector.broadcast %cst_16 : f32 to vector<8x128xf32>
      %31 = arith.mulf %29, %30 : vector<8x128xf32>
      %32 = math.floor %31 : vector<8x128xf32>
      %cst_17 = arith.constant -3.276800e+04 : f32
      %cst_18 = arith.constant 3.276700e+04 : f32
      %33 = vector.broadcast %cst_17 : f32 to vector<8x128xf32>
      %34 = arith.maximumf %33, %32 : vector<8x128xf32>
      %35 = vector.broadcast %cst_18 : f32 to vector<8x128xf32>
      %36 = arith.minimumf %35, %34 : vector<8x128xf32>
      %cst_19 = arith.constant 2.44140625E-4 : f32
      %37 = vector.broadcast %cst_19 : f32 to vector<8x128xf32>
      %38 = arith.mulf %36, %37 : vector<8x128xf32>
      %c0_20 = arith.constant 0 : index
      %c0_21 = arith.constant 0 : index
      %39 = vector.load %arg8[%c0_20, %c0_21] : memref<8x128xf32, #tpu.memory_space<vmem>>, vector<8x128xf32>
      %cst_22 = arith.constant 2.44140625E-4 : f32
      %40 = vector.broadcast %cst_22 : f32 to vector<8x128xf32>
      %41 = arith.mulf %39, %40 : vector<8x128xf32>
      %42 = math.floor %41 : vector<8x128xf32>
      %cst_23 = arith.constant -3.276800e+04 : f32
      %cst_24 = arith.constant 3.276700e+04 : f32
      %43 = vector.broadcast %cst_23 : f32 to vector<8x128xf32>
      %44 = arith.maximumf %43, %42 : vector<8x128xf32>
      %45 = vector.broadcast %cst_24 : f32 to vector<8x128xf32>
      %46 = arith.minimumf %45, %44 : vector<8x128xf32>
      %cst_25 = arith.constant 2.44140625E-4 : f32
      %47 = vector.broadcast %cst_25 : f32 to vector<8x128xf32>
      %48 = arith.mulf %46, %47 : vector<8x128xf32>
      %49 = arith.subf %38, %48 : vector<8x128xf32>
      %c0_26 = arith.constant 0 : index
      %c0_27 = arith.constant 0 : index
      %50 = vector.load %arg5[%c0_26, %c0_27] : memref<1x128xf32, #tpu.memory_space<vmem>>, vector<1x128xf32>
      %51 = vector.broadcast %50 : vector<1x128xf32> to vector<8x128xf32>
      %52 = arith.addf %49, %51 : vector<8x128xf32>
      %c0_28 = arith.constant 0 : index
      %c0_29 = arith.constant 0 : index
      %53 = vector.load %arg6[%c0_28, %c0_29] : memref<8x128xf32, #tpu.memory_space<vmem>>, vector<8x128xf32>
      tpu.vector_store %arg6[%c0_28, %c0_29], %52 {strides = array<i32>} : memref<8x128xf32, #tpu.memory_space<vmem>>, vector<8x128xf32>,
    } else {
    }
    return
  }
  func.func @transform_0(%arg0: i32, %arg1: i32, %arg2: i32) -> (i32, i32) {
    %c0_i32 = arith.constant 0 : i32
    return %arg0, %arg2 : i32, i32
  }
  func.func @transform_1(%arg0: i32, %arg1: i32, %arg2: i32) -> (i32, i32) {
    %c0_i32 = arith.constant 0 : i32
    return %arg2, %arg1 : i32, i32
  }
  func.func @transform_2(%arg0: i32, %arg1: i32, %arg2: i32) -> (i32, i32) {
    %c0_i32 = arith.constant 0 : i32
    %c0_i32_0 = arith.constant 0 : i32
    return %c0_i32, %arg1 : i32, i32
  }
  func.func @transform_3(%arg0: i32, %arg1: i32, %arg2: i32) -> (i32, i32) {
    %c0_i32 = arith.constant 0 : i32
    return %arg0, %arg1 : i32, i32
  }
}

</mosaic_0001>

<llo_original>
// kernel: tpu_custom_call.1
$region0: #{tpu_custom_call.1}
  #allocation0 [shape = 'u32[]', space=smem, size = 0x4, offset = 0x4, fixed_abs, tag = 'smem constant byte address 0x4 - core index']
  #allocation1 [shape = 'u32[144,128]{1,0:T(1,128)}', space=vmem, size = 0x12000, scoped, tag = 'internal scratch']
  #allocation2 [shape = 'f32[8,128]{1,0:T(8,128)}', space=vmem, size = 0x1000, scoped, tag = 'scratch operand']
  #allocation3 [shape = 'f32[8,128]{1,0:T(8,128)}', space=vmem, size = 0x1000, scoped, tag = 'scratch operand']
  %s0 = inlined_call_operand.hbm [shape: bf16[16,128], index: 0, kind: input, shape index: {}]
  %s1 = inlined_call_operand.hbm [shape: bf16[128,512], index: 1, kind: input, shape index: {}]
  %s2 = inlined_call_operand.vmem [shape: f32[1,128], index: 2, kind: input, shape index: {}]
  %s3 = inlined_call_operand.hbm [shape: f32[8,128], index: 3, kind: output, shape index: {}]
  %s4 = sld [smem:[#allocation0]]
  $region38: #{tpu_custom_call.1} parent=0
    _
  %s6 = ssub.s32 1, %s4
  %s7 = scalar_select 0, %s6, %s4
  $region1: #{tpu_custom_call.1} parent=0
    #allocation4 [shape = 'u8[4096]{0}', space=vmem, size = 0x1000, scoped, tag = 'input window, operand 0, single buffered']
    #allocation5 [shape = 's32[1]{0}', space=sflag, size = 0x4, scoped, tag = 'scoped memory for tpu_custom_call.1']
    #allocation6 [shape = 's32[1]{0}', space=sflag, size = 0x4, scoped, tag = 'scoped memory for tpu_custom_call.1']
    #allocation7 [shape = 'u8[131072]{0}', space=vmem, size = 0x20000, scoped, tag = 'input window, operand 1, single buffered']
    #allocation8 [shape = 's32[1]{0}', space=sflag, size = 0x4, scoped, tag = 'scoped memory for tpu_custom_call.1']
    #allocation9 [shape = 'u8[4096]{0}', space=vmem, size = 0x1000, scoped, tag = 'output window, operand 0, single buffered']
    %8 = vsyncpa [#allocation5], 0
    %9 = vsyncpa [#allocation8], 0
    %10 = vsyncpa [#allocation6], 0
    // Predicated region
    $region2: #{tpu_custom_call.1} parent=1 // pred_check
      _
    $region3: #{tpu_custom_call.1} parent=1 // pred_check_branch
      %12 = sbr.rel (0) target = $region5
    $region4: #{tpu_custom_call.1} parent=1 // pred_region
      %s14 = ssub.s32 128, 128
      %15 = vsyncadd [#allocation5], %s14
      %s16 = sshll.u32 [#allocation4], 4
      %s17 = int_to_ptr.vmem [resolvable:$true] %s16
      %22 = dma.hbm_to_vmem [thread:$0]  %s0, 128, %s17, [#allocation5], 64, 64, 4
    $region5: #{tpu_custom_call.1} parent=1 // pred_fallthru
      _
    // Predicated region
    $region6: #{tpu_custom_call.1} parent=1 // pred_check
      _
    $region7: #{tpu_custom_call.1} parent=1 // pred_check_branch
      %24 = sbr.rel (0) target = $region9
    $region8: #{tpu_custom_call.1} parent=1 // pred_region
      %s26 = ssub.s32 4096, 4096
      %27 = vsyncadd [#allocation8], %s26
      %s28 = sshll.u32 [#allocation7], 4
      %s29 = int_to_ptr.vmem [resolvable:$true] %s28
      %34 = dma.hbm_to_vmem [thread:$0]  %s1, 4096, %s29, [#allocation8], 256, 256, 16
    $region9: #{tpu_custom_call.1} parent=1 // pred_fallthru
      _
    // Predicated region
    $region10: #{tpu_custom_call.1} parent=1 // pred_check
      _
    $region11: #{tpu_custom_call.1} parent=1 // pred_check_branch
      %36 = sbr.rel (0) target = $region13
    $region12: #{tpu_custom_call.1} parent=1 // pred_region
      _
    $region13: #{tpu_custom_call.1} parent=1 // pred_fallthru
      _
    // Predicated region
    $region14: #{tpu_custom_call.1} parent=1 // pred_check
      _
    $region15: #{tpu_custom_call.1} parent=1 // pred_check_branch
      %38 = sbr.rel (0) target = $region17
    $region16: #{tpu_custom_call.1} parent=1 // pred_region
      %39 = dma.done [#allocation5], 128
    $region17: #{tpu_custom_call.1} parent=1 // pred_fallthru
      _
    // Predicated region
    $region18: #{tpu_custom_call.1} parent=1 // pred_check
      _
    $region19: #{tpu_custom_call.1} parent=1 // pred_check_branch
      %41 = sbr.rel (0) target = $region21
    $region20: #{tpu_custom_call.1} parent=1 // pred_region
      %42 = dma.done [#allocation8], 4096
    $region21: #{tpu_custom_call.1} parent=1 // pred_fallthru
      _
    %p44 = scmp.eq.s32.totalorder 0, 0
    // Predicated region
    $region22: #{tpu_custom_call.1} parent=1 // pred_check
      %p45 = pneg %p44
    $region23: #{tpu_custom_call.1} parent=1 // pred_check_branch
      %47 = sbr.rel (%p45) target = $region25
    $region24: #{tpu_custom_call.1} parent=1 // pred_region
      %48 = vst [vmem:[#allocation2] sm:$0xff] 0.0
      %49 = vst [vmem:[#allocation3] sm:$0xff] 0.0
    $region25: #{tpu_custom_call.1} parent=1 // pred_fallthru
      _
    %v50 = vld [vmem:[#allocation4] sm:$0xf]
    %v51 = vld [vmem:[#allocation4 + $0x4] sm:$0xf]
    %v52 = vld [vmem:[#allocation7] sm:$0xff]
    %v53 = vld [vmem:[#allocation7 + $0x8] sm:$0xff]
    %v54 = vld [vmem:[#allocation7 + $0x10] sm:$0xff]
    %v55 = vld [vmem:[#allocation7 + $0x18] sm:$0xff]
    %v56 = vld [vmem:[#allocation7 + $0x20] sm:$0xff]
    %v57 = vld [vmem:[#allocation7 + $0x28] sm:$0xff]
    %v58 = vld [vmem:[#allocation7 + $0x30] sm:$0xff]
    %v59 = vld [vmem:[#allocation7 + $0x38] sm:$0xff]
    %v60 = vld [vmem:[#allocation7 + $0x40] sm:$0xff]
    %v61 = vld [vmem:[#allocation7 + $0x48] sm:$0xff]
    %v62 = vld [vmem:[#allocation7 + $0x50] sm:$0xff]
    %v63 = vld [vmem:[#allocation7 + $0x58] sm:$0xff]
    %v64 = vld [vmem:[#allocation7 + $0x60] sm:$0xff]
    %v65 = vld [vmem:[#allocation7 + $0x68] sm:$0xff]
    %v66 = vld [vmem:[#allocation7 + $0x70] sm:$0xff]
    %v67 = vld [vmem:[#allocation7 + $0x78] sm:$0xff]
    %v68 = vld [vmem:[#allocation7 + $0x80] sm:$0xff]
    %v69 = vld [vmem:[#allocation7 + $0x88] sm:$0xff]
    %v70 = vld [vmem:[#allocation7 + $0x90] sm:$0xff]
    %v71 = vld [vmem:[#allocation7 + $0x98] sm:$0xff]
    %v72 = vld [vmem:[#allocation7 + $0xa0] sm:$0xff]
    %v73 = vld [vmem:[#allocation7 + $0xa8] sm:$0xff]
    %v74 = vld [vmem:[#allocation7 + $0xb0] sm:$0xff]
    %v75 = vld [vmem:[#allocation7 + $0xb8] sm:$0xff]
    %v76 = vld [vmem:[#allocation7 + $0xc0] sm:$0xff]
    %v77 = vld [vmem:[#allocation7 + $0xc8] sm:$0xff]
    %v78 = vld [vmem:[#allocation7 + $0xd0] sm:$0xff]
    %v79 = vld [vmem:[#allocation7 + $0xd8] sm:$0xff]
    %v80 = vld [vmem:[#allocation7 + $0xe0] sm:$0xff]
    %v81 = vld [vmem:[#allocation7 + $0xe8] sm:$0xff]
    %v82 = vld [vmem:[#allocation7 + $0xf0] sm:$0xff]
    %v83 = vld [vmem:[#allocation7 + $0xf8] sm:$0xff]
    %v86 = vunpack.c.l.b16 %v50
    %v87 = vunpack.c.l.b16 %v51
    %v88 = vpack.c.b16 %v87, %v86
    %v122 = vunpack.c.l.b16 %v52
    %v123 = vunpack.c.h.b16 %v52
    %v124 = vunpack.c.l.b16 %v53
    %v125 = vunpack.c.h.b16 %v53
    %v126 = vunpack.c.l.b16 %v54
    %v127 = vunpack.c.h.b16 %v54
    %v128 = vunpack.c.l.b16 %v55
    %v129 = vunpack.c.h.b16 %v55
    %v130 = vunpack.c.l.b16 %v56
    %v131 = vunpack.c.h.b16 %v56
    %v132 = vunpack.c.l.b16 %v57
    %v133 = vunpack.c.h.b16 %v57
    %v134 = vunpack.c.l.b16 %v58
    %v135 = vunpack.c.h.b16 %v58
    %v136 = vunpack.c.l.b16 %v59
    %v137 = vunpack.c.h.b16 %v59
    %v138 = vunpack.c.l.b16 %v60
    %v139 = vunpack.c.h.b16 %v60
    %v140 = vunpack.c.l.b16 %v61
    %v141 = vunpack.c.h.b16 %v61
    %v142 = vunpack.c.l.b16 %v62
    %v143 = vunpack.c.h.b16 %v62
    %v144 = vunpack.c.l.b16 %v63
    %v145 = vunpack.c.h.b16 %v63
    %v146 = vunpack.c.l.b16 %v64
    %v147 = vunpack.c.h.b16 %v64
    %v148 = vunpack.c.l.b16 %v65
    %v149 = vunpack.c.h.b16 %v65
    %v150 = vunpack.c.l.b16 %v66
    %v151 = vunpack.c.h.b16 %v66
    %v152 = vunpack.c.l.b16 %v67
    %v153 = vunpack.c.h.b16 %v67
    %v154 = vunpack.c.l.b16 %v68
    %v155 = vunpack.c.h.b16 %v68
    %v156 = vunpack.c.l.b16 %v69
    %v157 = vunpack.c.h.b16 %v69
    %v158 = vunpack.c.l.b16 %v70
    %v159 = vunpack.c.h.b16 %v70
    %v160 = vunpack.c.l.b16 %v71
    %v161 = vunpack.c.h.b16 %v71
    %v162 = vunpack.c.l.b16 %v72
    %v163 = vunpack.c.h.b16 %v72
    %v164 = vunpack.c.l.b16 %v73
    %v165 = vunpack.c.h.b16 %v73
    %v166 = vunpack.c.l.b16 %v74
    %v167 = vunpack.c.h.b16 %v74
    %v168 = vunpack.c.l.b16 %v75
    %v169 = vunpack.c.h.b16 %v75
    %v170 = vunpack.c.l.b16 %v76
    %v171 = vunpack.c.h.b16 %v76
    %v172 = vunpack.c.l.b16 %v77
    %v173 = vunpack.c.h.b16 %v77
    %v174 = vunpack.c.l.b16 %v78
    %v175 = vunpack.c.h.b16 %v78
    %v176 = vunpack.c.l.b16 %v79
    %v177 = vunpack.c.h.b16 %v79
    %v178 = vunpack.c.l.b16 %v80
    %v179 = vunpack.c.h.b16 %v80
    %v180 = vunpack.c.l.b16 %v81
    %v181 = vunpack.c.h.b16 %v81
    %v182 = vunpack.c.l.b16 %v82
    %v183 = vunpack.c.h.b16 %v82
    %v184 = vunpack.c.l.b16 %v83
    %v185 = vunpack.c.h.b16 %v83
    %v186 = vpack.c.b16 %v126, %v122
    %v187 = vpack.c.b16 %v127, %v123
    %v188 = vpack.c.b16 %v128, %v124
    %v189 = vpack.c.b16 %v129, %v125
    %v190 = vpack.c.b16 %v134, %v130
    %v191 = vpack.c.b16 %v135, %v131
    %v192 = vpack.c.b16 %v136, %v132
    %v193 = vpack.c.b16 %v137, %v133
    %v194 = vpack.c.b16 %v142, %v138
    %v195 = vpack.c.b16 %v143, %v139
    %v196 = vpack.c.b16 %v144, %v140
    %v197 = vpack.c.b16 %v145, %v141
    %v198 = vpack.c.b16 %v150, %v146
    %v199 = vpack.c.b16 %v151, %v147
    %v200 = vpack.c.b16 %v152, %v148
    %v201 = vpack.c.b16 %v153, %v149
    %v202 = vpack.c.b16 %v158, %v154
    %v203 = vpack.c.b16 %v159, %v155
    %v204 = vpack.c.b16 %v160, %v156
    %v205 = vpack.c.b16 %v161, %v157
    %v206 = vpack.c.b16 %v166, %v162
    %v207 = vpack.c.b16 %v167, %v163
    %v208 = vpack.c.b16 %v168, %v164
    %v209 = vpack.c.b16 %v169, %v165
    %v210 = vpack.c.b16 %v174, %v170
    %v211 = vpack.c.b16 %v175, %v171
    %v212 = vpack.c.b16 %v176, %v172
    %v213 = vpack.c.b16 %v177, %v173
    %v214 = vpack.c.b16 %v182, %v178
    %v215 = vpack.c.b16 %v183, %v179
    %v216 = vpack.c.b16 %v184, %v180
    %v217 = vpack.c.b16 %v185, %v181
    %250 = vmatprep.subr.bf16.mxu0 %v187
    %251 = vmatpush1.bf16.msra.mxu0 %v186
    %252 = vmatprep.subr.bf16.mxu0 %v191
    %253 = vmatpush1.bf16.msra.mxu0 %v190
    %254 = vmatprep.subr.bf16.mxu0 %v195
    %255 = vmatpush1.bf16.msra.mxu0 %v194
    %256 = vmatprep.subr.bf16.mxu0 %v199
    %257 = vmatpush1.bf16.msra.mxu0 %v198
    %258 = vmatprep.subr.bf16.mxu0 %v203
    %259 = vmatpush1.bf16.msra.mxu0 %v202
    %260 = vmatprep.subr.bf16.mxu0 %v207
    %261 = vmatpush1.bf16.msra.mxu0 %v206
    %262 = vmatprep.subr.bf16.mxu0 %v211
    %263 = vmatpush1.bf16.msra.mxu0 %v210
    %264 = vmatprep.subr.bf16.mxu0 %v215
    %265 = vmatpush1.bf16.msra.mxu0 %v214
    %266 = vmatprep.subr.bf16.mxu0 0
    %267 = vmatpush1.bf16.msra.mxu0 0
    %268 = vmatprep.subr.bf16.mxu0 0
    %269 = vmatpush1.bf16.msra.mxu0 0
    %270 = vmatprep.subr.bf16.mxu0 0
    %271 = vmatpush1.bf16.msra.mxu0 0
    %272 = vmatprep.subr.bf16.mxu0 0
    %273 = vmatpush1.bf16.msra.mxu0 0
    %274 = vmatprep.subr.bf16.mxu0 0
    %275 = vmatpush1.bf16.msra.mxu0 0
    %276 = vmatprep.subr.bf16.mxu0 0
    %277 = vmatpush1.bf16.msra.mxu0 0
    %278 = vmatprep.subr.bf16.mxu0 0
    %279 = vmatpush1.bf16.msra.mxu0 0
    %280 = vmatprep.subr.bf16.mxu0 0
    %281 = vmatpush1.bf16.msra.mxu0 0
    %282 = vmatprep.mubr.bf16.mxu0 0
    %283 = vmatmul.mubr.bf16.gmra.mrb[0].mxu0 %v88
    %v284 = vpop.f32.mrb[0].mxu0
    %v285 = vadd.f32 0.0, %v284
    %v286 = vpop.f32.mrb[0].mxu0
    %v287 = vadd.f32 0.0, %v286
    %v288 = vpop.f32.mrb[0].mxu0
    %v289 = vadd.f32 0.0, %v288
    %v290 = vpop.f32.mrb[0].mxu0
    %v291 = vadd.f32 0.0, %v290
    %292 = vdwg.mxu0
    %293 = vmatprep.subr.bf16.mxu0 %v189
    %294 = vmatpush1.bf16.msra.mxu0 %v188
    %295 = vmatprep.subr.bf16.mxu0 %v193
    %296 = vmatpush1.bf16.msra.mxu0 %v192
    %297 = vmatprep.subr.bf16.mxu0 %v197
    %298 = vmatpush1.bf16.msra.mxu0 %v196
    %299 = vmatprep.subr.bf16.mxu0 %v201
    %300 = vmatpush1.bf16.msra.mxu0 %v200
    %301 = vmatprep.subr.bf16.mxu0 %v205
    %302 = vmatpush1.bf16.msra.mxu0 %v204
    %303 = vmatprep.subr.bf16.mxu0 %v209
    %304 = vmatpush1.bf16.msra.mxu0 %v208
    %305 = vmatprep.subr.bf16.mxu0 %v213
    %306 = vmatpush1.bf16.msra.mxu0 %v212
    %307 = vmatprep.subr.bf16.mxu0 %v217
    %308 = vmatpush1.bf16.msra.mxu0 %v216
    %309 = vmatprep.subr.bf16.mxu0 0
    %310 = vmatpush1.bf16.msra.mxu0 0
    %311 = vmatprep.subr.bf16.mxu0 0
    %312 = vmatpush1.bf16.msra.mxu0 0
    %313 = vmatprep.subr.bf16.mxu0 0
    %314 = vmatpush1.bf16.msra.mxu0 0
    %315 = vmatprep.subr.bf16.mxu0 0
    %316 = vmatpush1.bf16.msra.mxu0 0
    %317 = vmatprep.subr.bf16.mxu0 0
    %318 = vmatpush1.bf16.msra.mxu0 0
    %319 = vmatprep.subr.bf16.mxu0 0
    %320 = vmatpush1.bf16.msra.mxu0 0
    %321 = vmatprep.subr.bf16.mxu0 0
    %322 = vmatpush1.bf16.msra.mxu0 0
    %323 = vmatprep.subr.bf16.mxu0 0
    %324 = vmatpush1.bf16.msra.mxu0 0
    %325 = vmatprep.mubr.bf16.mxu0 0
    %326 = vmatmul.mubr.bf16.gmra.mrb[0].mxu0 %v88
    %v327 = vpop.f32.mrb[0].mxu0
    %v328 = vadd.f32 0.0, %v327
    %v329 = vpop.f32.mrb[0].mxu0
    %v330 = vadd.f32 0.0, %v329
    %v331 = vpop.f32.mrb[0].mxu0
    %v332 = vadd.f32 0.0, %v331
    %v333 = vpop.f32.mrb[0].mxu0
    %v334 = vadd.f32 0.0, %v333
    %335 = vdwg.mxu0
    %v336 = vadd.f32 %v285, %v287
    %v337 = vadd.f32 %v289, %v291
    %v338 = vadd.f32 %v336, %v337
    %v339 = vadd.f32 %v328, %v330
    %v340 = vadd.f32 %v332, %v334
    %v341 = vadd.f32 %v339, %v340
    %v342 = vld [vmem:[#allocation2] sm:$0xff]
    %v343 = vadd.f32 %v342, %v338
    %344 = vst [vmem:[#allocation2] sm:$0xff] %v343
    %v345 = vld [vmem:[#allocation3] sm:$0xff]
    %v346 = vadd.f32 %v345, %v341
    %347 = vst [vmem:[#allocation3] sm:$0xff] %v346
    // Predicated region
    $region26: #{tpu_custom_call.1} parent=1 // pred_check
      %p348 = pneg %p44
    $region27: #{tpu_custom_call.1} parent=1 // pred_check_branch
      %350 = sbr.rel (%p348) target = $region29
    $region28: #{tpu_custom_call.1} parent=1 // pred_region
      %v351 = vld [vmem:[#allocation2] sm:$0xff]
      %v352 = vmul.f32 %v351, 0.00024414063
      %v353 = vfloor.f32 %v352
      %v354 = vmax.f32 %v353, -32768.0
      %v355 = vmin.f32 %v354, 32767.0
      %v356 = vmul.f32 %v355, 0.00024414063
      %v357 = vld [vmem:[#allocation3] sm:$0xff]
      %v358 = vmul.f32 %v357, 0.00024414063
      %v359 = vfloor.f32 %v358
      %v360 = vmax.f32 %v359, -32768.0
      %v361 = vmin.f32 %v360, 32767.0
      %v362 = vmul.f32 %v361, 0.00024414063
      %v363 = vsub.f32 %v356, %v362
      %v364 = vld [vmem:[%s2] sm:$0x1]
      %v366 = vlaneseq
      %v367 = vshrl.u32 %v366, 7
      %v368 = vsub.s32 0, %v367
      %v369 = vrot.slane %v364, %v368
      %v371 = vadd.f32 %v363, %v369
      %372 = vst [vmem:[#allocation9] sm:$0xff] %v371
    $region29: #{tpu_custom_call.1} parent=1 // pred_fallthru
      _
    // Predicated region
    $region30: #{tpu_custom_call.1} parent=1 // pred_check
      _
    $region31: #{tpu_custom_call.1} parent=1 // pred_check_branch
      %374 = sbr.rel (0) target = $region33
    $region32: #{tpu_custom_call.1} parent=1 // pred_region
      %s376 = ssub.s32 128, 128
      %377 = vsyncadd [#allocation6], %s376
      %s379 = sshll.u32 [#allocation9], 4
      %s380 = int_to_ptr.vmem [resolvable:$true] %s379
      %382 = dma.vmem_to_hbm [thread:$0]  %s380, 128, %s3, [#allocation6]
    $region33: #{tpu_custom_call.1} parent=1 // pred_fallthru
      _
    // Predicated region
    $region34: #{tpu_custom_call.1} parent=1 // pred_check
      _
    $region35: #{tpu_custom_call.1} parent=1 // pred_check_branch
      %384 = sbr.rel (0) target = $region37
    $region36: #{tpu_custom_call.1} parent=1 // pred_region
      %385 = dma.done [#allocation6], 128
    $region37: #{tpu_custom_call.1} parent=1 // pred_fallthru
      _
    %386 = vsyncpa [#allocation5], 1
    %387 = vsyncpa [#allocation8], 1
    %388 = vsyncpa [#allocation6], 1

</llo_original>
